<compile_context>
chip_gen: v5e
topology: v5e:2x2
jax: 0.10.0
libtpu: 0.0.40
codegen_flags: <defaults>
</compile_context>

<pallas_src>
import functools

import jax
import jax.numpy as jnp
from jax.experimental import pallas as pl
from jax.experimental.pallas import tpu as pltpu

LANES = 128            # lane width
MAX_BLOCK_ROWS = 4096  # (4096, 128) f32 = 2 MiB per block; double-buffered it
                       # stays well under the scoped-VMEM limit on v5e/v6e/v7x.
PIECE_ROWS = 64        # 8 vregs per inner piece: elem_fn intermediates stay at
                       # vreg scale instead of a full-block f32 VMEM temporary.
NUM_CORE_SPLITS = 2    # leading "parallel" grid axis -> both TensorCores on v7x


def _make_elem_fn(gan_type, target_is_real, real_label_val, fake_label_val):
    """Per-element loss against the constant target label (static at trace time)."""
    gan_type = gan_type.lower()
    if gan_type in ("gan", "ragan"):
        y = float(real_label_val if target_is_real else fake_label_val)

        def elem_fn(x):
            # Numerically-stable BCEWithLogits (same as PyTorch):
            #   max(x, 0) - x*y + log(1 + exp(-|x|))
            return jnp.maximum(x, 0.0) - x * y + jnp.log1p(jnp.exp(-jnp.abs(x)))

    elif gan_type == "lsgan":
        y = float(real_label_val if target_is_real else fake_label_val)

        def elem_fn(x):
            d = x - y
            return d * d

    elif gan_type == "wgan-gp":
        sign = -1.0 if target_is_real else 1.0

        def elem_fn(x):
            return sign * x

    else:
        raise NotImplementedError(
            "GAN type [{:s}] is not found".format(gan_type))
    return elem_fn


def _pick_piece_rows(block_rows):
    """Largest piece size (in rows) that divides the block; always a multiple of 8."""
    for p in (PIECE_ROWS, 32, 16, 8):
        if block_rows % p == 0:
            return p
    return block_rows  # unreachable: block_rows is always a multiple of 8


def _tree_sum_to_vreg(v):
    """(R, LANES) with R a multiple of 8 -> (8, LANES) via a small pairwise add tree."""
    parts = [v[k * 8:(k + 1) * 8, :] for k in range(v.shape[0] // 8)]
    while len(parts) > 1:
        nxt = [parts[j] + parts[j + 1] for j in range(0, len(parts) - 1, 2)]
        if len(parts) % 2:
            nxt.append(parts[-1])
        parts = nxt
    return parts[0]


def _reduce_block(elem_fn, x_ref, block_rows, piece_rows, n=None, base=None):
    """Sum elem_fn(x_ref) over one block -> (8, LANES) f32 per-lane partial sums.

    The block is streamed in `piece_rows`-row pieces (vreg-aligned static
    slices): upcast + elem_fn + optional mask + accumulate per piece, so the
    only live state is the small (piece_rows, 128) accumulator.  When `n` /
    `base` are given, elements whose flat index is >= n (zero padding or
    out-of-bounds garbage from a partial / phantom block) are masked to zero.
    """
    acc = None
    for k in range(block_rows // piece_rows):
        r0 = k * piece_rows
        xp = x_ref[r0:r0 + piece_rows, :].astype(jnp.float32)
        ep = elem_fn(xp)
        if n is not None:
            rows_i = jax.lax.broadcasted_iota(jnp.int32, ep.shape, 0) + r0
            lanes_i = jax.lax.broadcasted_iota(jnp.int32, ep.shape, 1)
            flat_idx = base + rows_i * LANES + lanes_i
            ep = jnp.where(flat_idx < n, ep, 0.0)
        acc = ep if acc is None else acc + ep
    return _tree_sum_to_vreg(acc)


def _gan_loss_kernel(elem_fn, n, block_rows, piece_rows, x_ref, out_ref):
    """Grid is (core_split, block); out_ref is a resident (8, 128) accumulator."""
    i = pl.program_id(1)
    blk = pl.program_id(0) * pl.num_programs(1) + i   # logical (unclamped) block index
    block_elems = block_rows * LANES

    @pl.when(i == 0)
    def _():
        out_ref[...] = jnp.zeros_like(out_ref)

    # Only the tail block (or a phantom block past the end of the array)
    # contains padding / out-of-bounds data; every other step is unmasked.
    is_tail = (blk + 1) * block_elems > n

    @pl.when(jnp.logical_not(is_tail))
    def _():
        out_ref[...] += _reduce_block(elem_fn, x_ref, block_rows, piece_rows)

    @pl.when(is_tail)
    def _():
        out_ref[...] += _reduce_block(elem_fn, x_ref, block_rows, piece_rows,
                                      n=n, base=blk * block_elems)


def gan_loss(x, target_is_real, gan_type="gan",
             real_label_val=1.0, fake_label_val=0.0):
    """Pallas equivalent of GANLoss.forward(input, target_is_real) -> scalar loss."""
    n = int(x.size)
    if n == 0:
        raise ValueError("GANLoss: empty input")

    elem_fn = _make_elem_fn(gan_type, bool(target_is_real),
                            real_label_val, fake_label_val)

    # Lane-dense 2D view in the input's NATIVE dtype (kernel upcasts per piece,
    # so bf16 inputs only move half the HBM bytes).  ravel of a contiguous
    # array is free; a pad copy is only paid when n is not already a multiple
    # of 128 (or the input is tiny).
    flat = jnp.ravel(x)
    pad_to = LANES if n >= 8 * LANES else 8 * LANES
    padded = ((n + pad_to - 1) // pad_to) * pad_to
    if padded != n:
        flat = jnp.pad(flat, (0, padded - n))
    rows = padded // LANES
    x2 = flat.reshape(rows, LANES)

    # Largest block that fits comfortably in VMEM; always a multiple of 8 rows
    # and never larger than the array, so a partial tail block is the only
    # irregular case (handled by the in-kernel mask).
    block_rows = min(MAX_BLOCK_ROWS, (rows // 8) * 8)
    piece_rows = _pick_piece_rows(block_rows)
    block_elems = block_rows * LANES
    if n >= 2 ** 31 - 4 * block_elems:
        raise ValueError("GANLoss: input too large for int32 flat indexing")

    n_blocks = pl.cdiv(rows, block_rows)
    num_splits = NUM_CORE_SPLITS if n_blocks >= NUM_CORE_SPLITS else 1
    blocks_per_core = pl.cdiv(n_blocks, num_splits)

    def x_index_map(c, i):
        # Clamp phantom blocks (when n_blocks does not split evenly across the
        # parallel axis) onto a valid block; the kernel masks them to zero.
        return (jnp.minimum(c * blocks_per_core + i, n_blocks - 1), 0)

    kernel = functools.partial(_gan_loss_kernel, elem_fn, n, block_rows,
                               piece_rows)

    partial = pl.pallas_call(
        kernel,
        out_shape=jax.ShapeDtypeStruct((num_splits * 8, LANES), jnp.float32),
        grid_spec=pltpu.PrefetchScalarGridSpec(
            num_scalar_prefetch=0,
            grid=(num_splits, blocks_per_core),
            in_specs=[pl.BlockSpec((block_rows, LANES), x_index_map)],
            # Lane-dense (8, 128) output block per core split, resident across
            # the reduction axis (accumulator pattern, unmasked full-vreg store).
            out_specs=pl.BlockSpec((8, LANES), lambda c, i: (c, 0)),
        ),
        compiler_params=pltpu.CompilerParams(
            dimension_semantics=("parallel", "arbitrary")),
    )(x2)

    # Finish the mean on the tiny (num_splits*8, 128) partial-sum slab.
    return jnp.sum(partial) / jnp.float32(n)


def _reference(x, target_is_real, gan_type, real_label_val=1.0, fake_label_val=0.0):
    """Plain-JAX reference matching the PyTorch module, for a sanity check."""
    gan_type = gan_type.lower()
    x = x.astype(jnp.float32)
    if gan_type in ("gan", "ragan"):
        y = real_label_val if target_is_real else fake_label_val
        t = jnp.full_like(x, y)
        loss = jnp.maximum(x, 0.0) - x * t + jnp.log1p(jnp.exp(-jnp.abs(x)))
        return jnp.mean(loss)
    if gan_type == "lsgan":
        y = real_label_val if target_is_real else fake_label_val
        return jnp.mean((x - y) ** 2)
    if gan_type == "wgan-gp":
        return -jnp.mean(x) if target_is_real else jnp.mean(x)
    raise NotImplementedError(gan_type)


if __name__ == "__main__":
    # Discriminator logits, NCHW: batch=2, channels=4, spatial=16x16.
    x_main = jax.random.normal(jax.random.PRNGKey(0), (2, 4, 16, 16),
                               dtype=jnp.float32)
    # Odd-sized inputs to exercise the padded / masked-tail / multi-block paths.
    x_odd = jax.random.normal(jax.random.PRNGKey(1), (3, 1, 33, 33),
                              dtype=jnp.float32)
    x_tiny = jax.random.normal(jax.random.PRNGKey(2), (2, 1, 7, 9),
                               dtype=jnp.float32)

    checks = [
        (x_main, "gan", True), (x_main, "gan", False),
        (x_main, "lsgan", True), (x_main, "lsgan", False),
        (x_main, "wgan-gp", True), (x_main, "wgan-gp", False),
        (x_main, "ragan", True),
        (x_odd, "gan", True), (x_odd, "wgan-gp", False),
        (x_tiny, "lsgan", False), (x_tiny, "gan", True),
    ]
    for xin, gan_type, target_is_real in checks:
        got = jax.block_until_ready(gan_loss(xin, target_is_real, gan_type))
        want = jax.block_until_ready(_reference(xin, target_is_real, gan_type))
        if not jnp.allclose(got, want, rtol=1e-5, atol=1e-5):
            raise AssertionError(
                f"mismatch for {gan_type}/{target_is_real}/{xin.shape}: "
                f"{got} vs {want}")

    print("KERNEL_OK")
</pallas_src>

<mosaic_0001>
module attributes {stable_mosaic.version = 11 : i64} {
  func.func @_gan_loss_kernel(%arg0: i32, %arg1: i32, %arg2: memref<16x128xf32, #tpu.memory_space<vmem>>, %arg3: memref<8x128xf32, #tpu.memory_space<vmem>>) attributes {dimension_semantics = [#tpu.dimension_semantics<parallel>, #tpu.dimension_semantics<arbitrary>], iteration_bounds = array<i64: 1, 1>, scalar_prefetch = 0 : i64, scratch_operands = 0 : i64, tpu.core_type = #tpu.core_type<tc>, window_params = [{transform_indices = @transform_0, window_bounds = array<i64: 16, 128>}, {transform_indices = @transform_1, window_bounds = array<i64: 8, 128>}]} {
    %c1_i32 = arith.constant 1 : i32
    %0 = arith.muli %arg0, %c1_i32 : i32
    %1 = arith.addi %0, %arg1 : i32
    %c0_i32 = arith.constant 0 : i32
    %2 = arith.cmpi eq, %arg1, %c0_i32 : i32
    %3 = arith.extui %2 : i1 to i32
    %c0_i32_0 = arith.constant 0 : i32
    %4 = arith.cmpi ne, %3, %c0_i32_0 : i32
    scf.if %4 {
      %cst = arith.constant 0.000000e+00 : f32
      %13 = vector.broadcast %cst : f32 to vector<8x128xf32>
      %c0 = arith.constant 0 : index
      %c0_5 = arith.constant 0 : index
      %14 = vector.load %arg3[%c0, %c0_5] : memref<8x128xf32, #tpu.memory_space<vmem>>, vector<8x128xf32>
      tpu.vector_store %arg3[%c0, %c0_5], %13 {strides = array<i32>} : memref<8x128xf32, #tpu.memory_space<vmem>>, vector<8x128xf32>,
    } else {
    }
    %c1_i32_1 = arith.constant 1 : i32
    %5 = arith.addi %1, %c1_i32_1 : i32
    %c2048_i32 = arith.constant 2048 : i32
    %6 = arith.muli %5, %c2048_i32 : i32
    %c2048_i32_2 = arith.constant 2048 : i32
    %7 = arith.cmpi sgt, %6, %c2048_i32_2 : i32
    %true = arith.constant true
    %8 = arith.xori %7, %true : i1
    %9 = arith.extui %8 : i1 to i32
    %c0_i32_3 = arith.constant 0 : i32
    %10 = arith.cmpi ne, %9, %c0_i32_3 : i32
    scf.if %10 {
      %c0 = arith.constant 0 : index
      %c0_5 = arith.constant 0 : index
      %13 = vector.load %arg3[%c0, %c0_5] : memref<8x128xf32, #tpu.memory_space<vmem>>, vector<8x128xf32>
      %c0_6 = arith.constant 0 : index
      %c0_7 = arith.constant 0 : index
      %14 = vector.load %arg2[%c0_6, %c0_7] : memref<16x128xf32, #tpu.memory_space<vmem>>, vector<16x128xf32>
      %cst = arith.constant 0.000000e+00 : f32
      %15 = vector.broadcast %cst : f32 to vector<16x128xf32>
      %16 = arith.maximumf %14, %15 : vector<16x128xf32>
      %cst_8 = arith.constant 1.000000e+00 : f32
      %17 = vector.broadcast %cst_8 : f32 to vector<16x128xf32>
      %18 = arith.mulf %14, %17 : vector<16x128xf32>
      %19 = arith.subf %16, %18 : vector<16x128xf32>
      %20 = math.absf %14 : vector<16x128xf32>
      %cst_9 = arith.constant 0.000000e+00 : f32
      %21 = vector.broadcast %cst_9 : f32 to vector<16x128xf32>
      %22 = arith.subf %21, %20 : vector<16x128xf32>
      %23 = math.exp %22 : vector<16x128xf32>
      %24 = math.log1p %23 : vector<16x128xf32>
      %25 = arith.addf %19, %24 : vector<16x128xf32>
      %26 = vector.extract_strided_slice %25 {offsets = [0, 0], sizes = [8, 128], strides = [1, 1]} : vector<16x128xf32> to vector<8x128xf32>
      %27 = vector.extract_strided_slice %25 {offsets = [8, 0], sizes = [8, 128], strides = [1, 1]} : vector<16x128xf32> to vector<8x128xf32>
      %28 = arith.addf %26, %27 : vector<8x128xf32>
      %29 = arith.addf %13, %28 : vector<8x128xf32>
      %c0_10 = arith.constant 0 : index
      %c0_11 = arith.constant 0 : index
      %30 = vector.load %arg3[%c0_10, %c0_11] : memref<8x128xf32, #tpu.memory_space<vmem>>, vector<8x128xf32>
      tpu.vector_store %arg3[%c0_10, %c0_11], %29 {strides = array<i32>} : memref<8x128xf32, #tpu.memory_space<vmem>>, vector<8x128xf32>,
    } else {
    }
    %11 = arith.extui %7 : i1 to i32
    %c0_i32_4 = arith.constant 0 : i32
    %12 = arith.cmpi ne, %11, %c0_i32_4 : i32
    scf.if %12 {
      %c0 = arith.constant 0 : index
      %c0_5 = arith.constant 0 : index
      %13 = vector.load %arg3[%c0, %c0_5] : memref<8x128xf32, #tpu.memory_space<vmem>>, vector<8x128xf32>
      %c2048_i32_6 = arith.constant 2048 : i32
      %14 = arith.muli %1, %c2048_i32_6 : i32
      %c0_7 = arith.constant 0 : index
      %c0_8 = arith.constant 0 : index
      %15 = vector.load %arg2[%c0_7, %c0_8] : memref<16x128xf32, #tpu.memory_space<vmem>>, vector<16x128xf32>
      %cst = arith.constant 0.000000e+00 : f32
      %16 = vector.broadcast %cst : f32 to vector<16x128xf32>
      %17 = arith.maximumf %15, %16 : vector<16x128xf32>
      %cst_9 = arith.constant 1.000000e+00 : f32
      %18 = vector.broadcast %cst_9 : f32 to vector<16x128xf32>
      %19 = arith.mulf %15, %18 : vector<16x128xf32>
      %20 = arith.subf %17, %19 : vector<16x128xf32>
      %21 = math.absf %15 : vector<16x128xf32>
      %cst_10 = arith.constant 0.000000e+00 : f32
      %22 = vector.broadcast %cst_10 : f32 to vector<16x128xf32>
      %23 = arith.subf %22, %21 : vector<16x128xf32>
      %24 = math.exp %23 : vector<16x128xf32>
      %25 = math.log1p %24 : vector<16x128xf32>
      %26 = arith.addf %20, %25 : vector<16x128xf32>
      %27 = tpu.iota {dimensions = array<i32: 0>} : vector<16x128xi32>
      %c0_i32_11 = arith.constant 0 : i32
      %28 = vector.broadcast %c0_i32_11 : i32 to vector<16x128xi32>
      %29 = arith.addi %27, %28 : vector<16x128xi32>
      %30 = tpu.iota {dimensions = array<i32: 1>} : vector<16x128xi32>
      %c128_i32 = arith.constant 128 : i32
      %31 = vector.broadcast %c128_i32 : i32 to vector<16x128xi32>
      %32 = arith.muli %29, %31 : vector<16x128xi32>
      %33 = vector.broadcast %14 : i32 to vector<16x128xi32>
      %34 = arith.addi %33, %32 : vector<16x128xi32>
      %35 = arith.addi %34, %30 : vector<16x128xi32>
      %c2048_i32_12 = arith.constant 2048 : i32
      %36 = vector.broadcast %c2048_i32_12 : i32 to vector<16x128xi32>
      %37 = arith.cmpi slt, %35, %36 : vector<16x128xi32>
      %cst_13 = arith.constant 0.000000e+00 : f32
      %38 = vector.broadcast %cst_13 : f32 to vector<16x128xf32>
      %39 = arith.select %37, %26, %38 : vector<16x128xi1>, vector<16x128xf32>
      %40 = vector.extract_strided_slice %39 {offsets = [0, 0], sizes = [8, 128], strides = [1, 1]} : vector<16x128xf32> to vector<8x128xf32>
      %41 = vector.extract_strided_slice %39 {offsets = [8, 0], sizes = [8, 128], strides = [1, 1]} : vector<16x128xf32> to vector<8x128xf32>
      %42 = arith.addf %40, %41 : vector<8x128xf32>
      %43 = arith.addf %13, %42 : vector<8x128xf32>
      %c0_14 = arith.constant 0 : index
      %c0_15 = arith.constant 0 : index
      %44 = vector.load %arg3[%c0_14, %c0_15] : memref<8x128xf32, #tpu.memory_space<vmem>>, vector<8x128xf32>
      tpu.vector_store %arg3[%c0_14, %c0_15], %43 {strides = array<i32>} : memref<8x128xf32, #tpu.memory_space<vmem>>, vector<8x128xf32>,
    } else {
    }
    return
  }
  func.func @transform_0(%arg0: i32, %arg1: i32) -> (i32, i32) {
    %c1_i32 = arith.constant 1 : i32
    %0 = arith.muli %arg0, %c1_i32 : i32
    %1 = arith.addi %0, %arg1 : i32
    %c0_i32 = arith.constant 0 : i32
    %2 = arith.minsi %1, %c0_i32 : i32
    %c0_i32_0 = arith.constant 0 : i32
    %c0_i32_1 = arith.constant 0 : i32
    return %2, %c0_i32_0 : i32, i32
  }
  func.func @transform_1(%arg0: i32, %arg1: i32) -> (i32, i32) {
    %c0_i32 = arith.constant 0 : i32
    %c0_i32_0 = arith.constant 0 : i32
    return %arg0, %c0_i32 : i32, i32
  }
}

</mosaic_0001>

<llo_original>
// kernel: tpu_custom_call.1
$region0: #{tpu_custom_call.1}
  #allocation0 [shape = 'u32[]', space=smem, size = 0x4, offset = 0x4, fixed_abs, tag = 'smem constant byte address 0x4 - core index']
  #allocation1 [shape = 'u32[72,128]{1,0:T(1,128)}', space=vmem, size = 0x9000, scoped, tag = 'internal scratch']
  %s0 = inlined_call_operand.hbm [shape: f32[16,128], index: 0, kind: input, shape index: {}]
  %s1 = inlined_call_operand.hbm [shape: f32[8,128], index: 1, kind: output, shape index: {}]
  %s2 = sld [smem:[#allocation0]]
  $region30: #{tpu_custom_call.1} parent=0
    _
  %s4 = ssub.s32 1, %s2
  %s5 = scalar_select 0, %s4, %s2
  $region1: #{tpu_custom_call.1} parent=0
    #allocation2 [shape = 'u8[8192]{0}', space=vmem, size = 0x2000, scoped, tag = 'input window, operand 0, single buffered']
    #allocation3 [shape = 's32[1]{0}', space=sflag, size = 0x4, scoped, tag = 'scoped memory for tpu_custom_call.1']
    #allocation4 [shape = 's32[1]{0}', space=sflag, size = 0x4, scoped, tag = 'scoped memory for tpu_custom_call.1']
    #allocation5 [shape = 'u8[4096]{0}', space=vmem, size = 0x1000, scoped, tag = 'output window, operand 0, single buffered']
    %6 = vsyncpa [#allocation3], 0
    %7 = vsyncpa [#allocation4], 0
    // Predicated region
    $region2: #{tpu_custom_call.1} parent=1 // pred_check
      _
    $region3: #{tpu_custom_call.1} parent=1 // pred_check_branch
      %9 = sbr.rel (0) target = $region5
    $region4: #{tpu_custom_call.1} parent=1 // pred_region
      %s10 = sadd.s32 0, 0
      %p11 = scmp.lt.s32.totalorder %s10, 0
      %s12 = scalar_select %p11, %s10, 0
      %s13 = smul.u32 2, %s12
      %15 = vsyncadd [#allocation3], 0
      %s16 = smul.addr %s13, 8
      %s17 = scalar_lea.hbm %s0, %s16
      %s18 = sshll.u32 %s17, 4
      %s19 = int_to_ptr.hbm [resolvable:$true] %s18
      %s20 = sshll.u32 [#allocation2], 4
      %s21 = int_to_ptr.vmem [resolvable:$true] %s20
      %26 = dma.hbm_to_vmem [thread:$0]  %s19, 256, %s21, [#allocation3], 128, 128, 8
    $region5: #{tpu_custom_call.1} parent=1 // pred_fallthru
      _
    // Predicated region
    $region6: #{tpu_custom_call.1} parent=1 // pred_check
      _
    $region7: #{tpu_custom_call.1} parent=1 // pred_check_branch
      %28 = sbr.rel (0) target = $region9
    $region8: #{tpu_custom_call.1} parent=1 // pred_region
      %30 = dma.done [#allocation3], 256
    $region9: #{tpu_custom_call.1} parent=1 // pred_fallthru
      _
    %s31 = sadd.s32 0, 0
    %p32 = scmp.lt.s32.totalorder %s31, 0
    %s33 = scalar_select %p32, %s31, 0
    %s34 = smul.u32 2, %s33
    %s35 = sadd.s32 0, 0
    %p36 = scmp.eq.s32.totalorder 0, 0
    // Predicated region
    $region10: #{tpu_custom_call.1} parent=1 // pred_check
      %p37 = pneg %p36
    $region11: #{tpu_custom_call.1} parent=1 // pred_check_branch
      %39 = sbr.rel (%p37) target = $region13
    $region12: #{tpu_custom_call.1} parent=1 // pred_region
      %40 = vst [vmem:[#allocation5] sm:$0xff] 0.0
    $region13: #{tpu_custom_call.1} parent=1 // pred_fallthru
      _
    %s41 = sadd.s32 %s35, 1
    %s42 = smul.u32 %s41, 2048
    %p43 = scmp.gt.s32.totalorder %s42, 2048
    %p44 = scmp.le.s32.totalorder %s42, 2048
    // Predicated region
    $region14: #{tpu_custom_call.1} parent=1 // pred_check
      %p45 = pneg %p44
    $region15: #{tpu_custom_call.1} parent=1 // pred_check_branch
      %47 = sbr.rel (%p45) target = $region17
    $region16: #{tpu_custom_call.1} parent=1 // pred_region
      %v48 = vld [vmem:[#allocation5] sm:$0xff]
      %v49 = vld [vmem:[#allocation2] sm:$0xff]
      %v50 = vld [vmem:[#allocation2 + $0x8] sm:$0xff]
      %v51 = vmax.f32 %v49, 0.0
      %v52 = vmax.f32 %v50, 0.0
      %v53 = vsub.f32 %v51, %v49
      %v54 = vsub.f32 %v52, %v50
      %v55 = vand.u32 2147483647, %v49
      %v56 = vand.u32 2147483647, %v50
      %v57 = vsub.f32 0.0, %v55
      %v58 = vsub.f32 0.0, %v56
      %v59 = vmul.f32 %v57, 1.442695
      %v60 = vpow.pop %v59
      %v61 = vmul.f32 %v58, 1.442695
      %v62 = vpow.pop %v61
      %v63 = vadd.f32 %v60, 1.0
      %v64 = vlog2.pop %v63
      %v65 = vmul.f32 %v64, 0.6931472
      %v66 = vmul.f32 -0.5, %v60
      %v67 = vadd.f32 %v66, 1.0
      %v68 = vmul.f32 %v67, %v60
      %v69 = vand.u32 2147483647, %v60
      %vm70 = vcmp.lt.f32.partialorder %v69, 0.0004427343
      %v71 = vsel %vm70, %v68, %v65
      %v72 = vadd.f32 %v62, 1.0
      %v73 = vlog2.pop %v72
      %v74 = vmul.f32 %v73, 0.6931472
      %v75 = vmul.f32 -0.5, %v62
      %v76 = vadd.f32 %v75, 1.0
      %v77 = vmul.f32 %v76, %v62
      %v78 = vand.u32 2147483647, %v62
      %vm79 = vcmp.lt.f32.partialorder %v78, 0.0004427343
      %v80 = vsel %vm79, %v77, %v74
      %v81 = vadd.f32 %v53, %v71
      %v82 = vadd.f32 %v54, %v80
      %v83 = vadd.f32 %v81, %v82
      %v84 = vadd.f32 %v48, %v83
      %85 = vst [vmem:[#allocation5] sm:$0xff] %v84
    $region17: #{tpu_custom_call.1} parent=1 // pred_fallthru
      _
    // Predicated region
    $region18: #{tpu_custom_call.1} parent=1 // pred_check
      %p86 = pneg %p43
    $region19: #{tpu_custom_call.1} parent=1 // pred_check_branch
      %88 = sbr.rel (%p86) target = $region21
    $region20: #{tpu_custom_call.1} parent=1 // pred_region
      %v89 = vld [vmem:[#allocation5] sm:$0xff]
      %s90 = smul.u32 %s35, 2048
      %v91 = vld [vmem:[#allocation2] sm:$0xff]
      %v92 = vld [vmem:[#allocation2 + $0x8] sm:$0xff]
      %v93 = vmax.f32 %v91, 0.0
      %v94 = vmax.f32 %v92, 0.0
      %v95 = vsub.f32 %v93, %v91
      %v96 = vsub.f32 %v94, %v92
      %v97 = vand.u32 2147483647, %v91
      %v98 = vand.u32 2147483647, %v92
      %v99 = vsub.f32 0.0, %v97
      %v100 = vsub.f32 0.0, %v98
      %v101 = vmul.f32 %v99, 1.442695
      %v102 = vpow.pop %v101
      %v103 = vmul.f32 %v100, 1.442695
      %v104 = vpow.pop %v103
      %v105 = vadd.f32 %v102, 1.0
      %v106 = vlog2.pop %v105
      %v107 = vmul.f32 %v106, 0.6931472
      %v108 = vmul.f32 -0.5, %v102
      %v109 = vadd.f32 %v108, 1.0
      %v110 = vmul.f32 %v109, %v102
      %v111 = vand.u32 2147483647, %v102
      %vm112 = vcmp.lt.f32.partialorder %v111, 0.0004427343
      %v113 = vsel %vm112, %v110, %v107
      %v114 = vadd.f32 %v104, 1.0
      %v115 = vlog2.pop %v114
      %v116 = vmul.f32 %v115, 0.6931472
      %v117 = vmul.f32 -0.5, %v104
      %v118 = vadd.f32 %v117, 1.0
      %v119 = vmul.f32 %v118, %v104
      %v120 = vand.u32 2147483647, %v104
      %vm121 = vcmp.lt.f32.partialorder %v120, 0.0004427343
      %v122 = vsel %vm121, %v119, %v116
      %v123 = vadd.f32 %v95, %v113
      %v124 = vadd.f32 %v96, %v122
      %v125 = vlaneseq
      %v126 = vshrl.u32 %v125, 7
      %v127 = vadd.s32 %v126, 8
      %v128 = vlaneseq
      %v129 = vand.u32 %v128, 127
      %v130 = vmul.u32 %v126, 128
      %v131 = vmul.u32 %v127, 128
      %v132 = vstv %s90
      %v133 = vadd.s32 %v132, %v130
      %v134 = vadd.s32 %v132, %v131
      %v135 = vadd.s32 %v133, %v129
      %v136 = vadd.s32 %v134, %v129
      %vm137 = vcmp.lt.s32.totalorder %v135, 2048
      %vm138 = vcmp.lt.s32.totalorder %v136, 2048
      %v139 = vsel %vm137, %v123, 0.0
      %v140 = vsel %vm138, %v124, 0.0
      %v141 = vadd.f32 %v139, %v140
      %v142 = vadd.f32 %v89, %v141
      %143 = vst [vmem:[#allocation5] sm:$0xff] %v142
    $region21: #{tpu_custom_call.1} parent=1 // pred_fallthru
      _
    // Predicated region
    $region22: #{tpu_custom_call.1} parent=1 // pred_check
      _
    $region23: #{tpu_custom_call.1} parent=1 // pred_check_branch
      %145 = sbr.rel (0) target = $region25
    $region24: #{tpu_custom_call.1} parent=1 // pred_region
      %147 = vsyncadd [#allocation4], 0
      %s149 = sshll.u32 [#allocation5], 4
      %s150 = int_to_ptr.vmem [resolvable:$true] %s149
      %s151 = sshll.u32 %s1, 4
      %s152 = int_to_ptr.hbm [resolvable:$true] %s151
      %154 = dma.vmem_to_hbm [thread:$0]  %s150, 128, %s152, [#allocation4]
    $region25: #{tpu_custom_call.1} parent=1 // pred_fallthru
      _
    // Predicated region
    $region26: #{tpu_custom_call.1} parent=1 // pred_check
      _
    $region27: #{tpu_custom_call.1} parent=1 // pred_check_branch
      %156 = sbr.rel (0) target = $region29
    $region28: #{tpu_custom_call.1} parent=1 // pred_region
      %158 = dma.done [#allocation4], 128
    $region29: #{tpu_custom_call.1} parent=1 // pred_fallthru
      _
    %159 = vsyncpa [#allocation3], 1
    %160 = vsyncpa [#allocation4], 1

</llo_original>
